<compile_context>
chip_gen: v7x
topology: tpu7x:2x2x1
jax: 0.10.0
libtpu: 0.0.40
codegen_flags: <defaults>
</compile_context>

<pallas_src>
import jax
import jax.numpy as jnp
from jax.experimental import pallas as pl
from jax.experimental.pallas import tpu as pltpu

LANE = 128


def _round_up(x, m):
    return ((x + m - 1) // m) * m


def _round_down(x, m):
    return (x // m) * m


def _vmem_budget_bytes():
    """Scoped-VMEM budget with headroom, per generation (fallback = v7x-safe)."""
    cap = 64 << 20  # conservative default: v7x physical per-TC VMEM
    try:
        cap = int(pltpu.get_tpu_info().vmem_capacity_bytes)
    except Exception:
        pass
    # 3/4 of physical, never above 96 MiB (v5e/v6e have 128 MiB physical).
    return int(min(cap * 3 // 4, 96 << 20))


def _choose_tm(M, B, bytes_per_lane, tile_budget, hard_cap=16384, min_steps=8):
    """Pick the spatial tile: as large as VMEM allows, lane-dense, with enough
    grid steps left over for megacore sharding on v7x."""
    tm = _round_down(min(tile_budget // bytes_per_lane, hard_cap), LANE)
    tm = max(tm, LANE)
    if tm >= M:
        tm = M  # single full-extent tile per batch row (full-dim exception)
    # Occupancy guard: keep >= min_steps total grid steps when possible.
    if B * pl.cdiv(M, tm) < min_steps and M > LANE:
        spatial_steps = -(-min_steps // B)  # ceil
        tm_occ = max(LANE, _round_up(-(-M // spatial_steps), LANE))
        tm = min(tm, tm_occ)
        if tm >= M:
            tm = M
    return tm


def _mlp_kernel_wide(x_ref, w1_ref, b1_ref, w2_ref, b2_ref, o_ref):
    """One (batch, spatial) tile: out = W2 @ relu(W1 @ x + b1) + b2 + x.

    Shapes inside the kernel:
      x_ref : [1, D, tm]  (input dtype, NCHW slab, spatial on lanes)
      w1_ref: [H, D] bf16     b1_ref: [H, 1] f32
      w2_ref: [H, H] bf16     b2_ref: [H, 1] f32
      o_ref : [1, H, tm]
    """
    x_in = x_ref[0]                                   # [D, tm]
    x_f32 = x_in.astype(jnp.float32)                  # residual / bias path
    # bf16 MXU operand; skip the re-cast when the input is already bf16.
    x_mxu = x_in if x_in.dtype == jnp.bfloat16 else x_f32.astype(jnp.bfloat16)

    h = jnp.dot(w1_ref[...], x_mxu, preferred_element_type=jnp.float32)
    h = jnp.maximum(h + b1_ref[...], 0.0)             # bias + ReLU (f32 VPU)
    # TODO(synk): nn.Dropout is identity in eval mode; training-mode RNG mask
    # (pltpu.prng_random_bits) is intentionally not applied here.
    y = jnp.dot(w2_ref[...], h.astype(jnp.bfloat16),
                preferred_element_type=jnp.float32)
    y = y + b2_ref[...] + x_f32                        # bias + residual link
    o_ref[0] = y.astype(o_ref.dtype)


def _mlp_kernel_batched(x_ref, w1_ref, b1_ref, w2_ref, b2_ref, o_ref):
    """Small-spatial fallback: several batch elements per grid step.

      x_ref : [Bt, D, M]   o_ref : [Bt, H, M]   (M < 128, full extent)
    """
    Bt = x_ref.shape[0]
    w1 = w1_ref[...]
    w2 = w2_ref[...]
    b1 = b1_ref[...]
    b2 = b2_ref[...]
    for b in range(Bt):                               # static, small unroll
        x_in = x_ref[b]                               # [D, M]
        x_f32 = x_in.astype(jnp.float32)
        x_mxu = x_in if x_in.dtype == jnp.bfloat16 else x_f32.astype(jnp.bfloat16)
        h = jnp.dot(w1, x_mxu, preferred_element_type=jnp.float32)
        h = jnp.maximum(h + b1, 0.0)
        y = jnp.dot(w2, h.astype(jnp.bfloat16), preferred_element_type=jnp.float32)
        y = y + b2 + x_f32
        o_ref[b] = y.astype(o_ref.dtype)


def mlp_forward(x_nchw, w1, b1, w2, b2):
    """Forward pass.

    x_nchw: [B, D, *spatial]  (NCHW layout, as the PyTorch module sees it).
            f32 or bf16; output dtype matches the input dtype.
    w1:     [H, D]  (fc1 Conv2d weight, squeezed)   b1: [H]
    w2:     [H, H]  (fc2 Conv2d weight, squeezed)   b2: [H]
    """
    B, D = x_nchw.shape[0], x_nchw.shape[1]
    H = w1.shape[0]
    assert w1.shape == (H, D) and w2.shape == (H, H)
    assert H == D, "residual link requires hidden_dim == input_dim"

    M = 1
    for s in x_nchw.shape[2:]:
        M *= s
    # Free reshape (trailing dims contiguous): NCHW -> [B, D, M]; no transpose.
    x3 = x_nchw.reshape(B, D, M)

    # bf16 weights: halve weight DMA / VMEM footprint, MXU bf16 fast path.
    w1_b = w1.astype(jnp.bfloat16)
    w2_b = w2.astype(jnp.bfloat16)
    b1_c = b1.reshape(H, 1).astype(jnp.float32)
    b2_c = b2.reshape(H, 1).astype(jnp.float32)

    in_bytes = jnp.dtype(x_nchw.dtype).itemsize
    weight_bytes = 2 * ((H * D + H * H) * 2 + 2 * H * 4)   # double-buffered
    vmem_budget = _vmem_budget_bytes()

    cost = pl.CostEstimate(
        flops=int(2 * B * M * (D * H + H * H)),
        transcendentals=0,
        bytes_accessed=int(B * M * (D + H) * in_bytes + weight_bytes),
    )

    if M >= LANE:
        # ---- Wide, lane-dense path: grid over (batch, spatial tiles). ----
        # Per-lane VMEM: in/out double buffers + in-kernel intermediates
        # (x_f32, x_bf16, h, h_bf16, y).
        inter_per_lane = D * (4 + 2) + H * (4 + 2 + 4)
        bytes_per_lane = 2 * (D + H) * in_bytes + inter_per_lane
        tile_budget = max(vmem_budget - weight_bytes - (2 << 20), 1 << 20)
        tm = _choose_tm(M, B, bytes_per_lane, tile_budget)
        grid = (B, pl.cdiv(M, tm))
        # Ragged spatial tails: boundary-block padding is safe because the
        # contraction axis is the (full) channel axis; garbage lanes never
        # contaminate real outputs and are dropped on store.
        out = pl.pallas_call(
            _mlp_kernel_wide,
            out_shape=jax.ShapeDtypeStruct((B, H, M), x_nchw.dtype),
            grid_spec=pltpu.PrefetchScalarGridSpec(
                num_scalar_prefetch=0,
                grid=grid,
                in_specs=[
                    pl.BlockSpec((1, D, tm), lambda b, i: (b, 0, i)),  # x slab
                    pl.BlockSpec((H, D), lambda b, i: (0, 0)),         # W1
                    pl.BlockSpec((H, 1), lambda b, i: (0, 0)),         # b1
                    pl.BlockSpec((H, H), lambda b, i: (0, 0)),         # W2
                    pl.BlockSpec((H, 1), lambda b, i: (0, 0)),         # b2
                ],
                out_specs=pl.BlockSpec((1, H, tm), lambda b, i: (b, 0, i)),
            ),
            compiler_params=pltpu.CompilerParams(
                dimension_semantics=("parallel", "parallel"),
                vmem_limit_bytes=int(vmem_budget),
            ),
            cost_estimate=cost,
        )(x3, w1_b, b1_c, w2_b, b2_c)
    else:
        # ---- Small-spatial fallback: block several batches per grid step. --
        Bt = min(B, 8)
        grid = (pl.cdiv(B, Bt),)
        out = pl.pallas_call(
            _mlp_kernel_batched,
            out_shape=jax.ShapeDtypeStruct((B, H, M), x_nchw.dtype),
            grid_spec=pltpu.PrefetchScalarGridSpec(
                num_scalar_prefetch=0,
                grid=grid,
                in_specs=[
                    pl.BlockSpec((Bt, D, M), lambda i: (i, 0, 0)),     # x slab
                    pl.BlockSpec((H, D), lambda i: (0, 0)),            # W1
                    pl.BlockSpec((H, 1), lambda i: (0, 0)),            # b1
                    pl.BlockSpec((H, H), lambda i: (0, 0)),            # W2
                    pl.BlockSpec((H, 1), lambda i: (0, 0)),            # b2
                ],
                out_specs=pl.BlockSpec((Bt, H, M), lambda i: (i, 0, 0)),
            ),
            compiler_params=pltpu.CompilerParams(
                dimension_semantics=("parallel",),
                vmem_limit_bytes=int(min(vmem_budget, 48 << 20)),
            ),
            cost_estimate=cost,
        )(x3, w1_b, b1_c, w2_b, b2_c)

    return out.reshape(x_nchw.shape)


def reference_forward(x_nchw, w1, b1, w2, b2):
    """Pure-JAX f32 reference (eval mode, dropout = identity)."""
    h = jnp.einsum("oi,binl->bonl", w1, x_nchw) + b1.reshape(1, -1, 1, 1)
    h = jnp.maximum(h, 0.0)
    y = jnp.einsum("oi,binl->bonl", w2, h) + b2.reshape(1, -1, 1, 1)
    return y + x_nchw


if __name__ == "__main__":
    # Shapes consistent with the module: input_dim == hidden_dim == 32
    # (residual link).  Two cases exercise both kernel paths:
    #   1) B=2, N=16, L=1   -> M=16  (small-spatial batched fallback)
    #   2) B=2, N=16, L=16  -> M=256 (wide lane-dense path)
    D = 32
    H = D

    key = jax.random.PRNGKey(0)
    kx1, kx2, kw1, kb1, kw2, kb2 = jax.random.split(key, 6)

    # Deterministic PyTorch-like uniform init.  Weights kept in the natural
    # Conv2d orientation [out, in] (no transpose needed for W @ X in NCHW).
    bound1 = 1.0 / (D ** 0.5)
    bound2 = 1.0 / (H ** 0.5)
    w1 = jax.random.uniform(kw1, (H, D), minval=-bound1, maxval=bound1,
                            dtype=jnp.float32)
    b1 = jax.random.uniform(kb1, (H,), minval=-bound1, maxval=bound1,
                            dtype=jnp.float32)
    w2 = jax.random.uniform(kw2, (H, H), minval=-bound2, maxval=bound2,
                            dtype=jnp.float32)
    b2 = jax.random.uniform(kb2, (H,), minval=-bound2, maxval=bound2,
                            dtype=jnp.float32)

    # Case 1: small spatial extent (batched fallback path).
    x_small = jax.random.normal(kx1, (2, D, 16, 1), dtype=jnp.float32)
    out_small = jax.block_until_ready(mlp_forward(x_small, w1, b1, w2, b2))
    ref_small = reference_forward(x_small, w1, b1, w2, b2)
    assert out_small.shape == x_small.shape
    # Tolerance loosened vs the pure-f32 reference because the kernel uses
    # bf16 matmul operands (f32 accumulation / bias / residual).
    assert jnp.allclose(out_small, ref_small, atol=5e-2, rtol=5e-2), \
        "mismatch vs reference (small-spatial path)"

    # Case 2: lane-dense wide path.
    x_wide = jax.random.normal(kx2, (2, D, 16, 16), dtype=jnp.float32)
    out_wide = jax.block_until_ready(mlp_forward(x_wide, w1, b1, w2, b2))
    ref_wide = reference_forward(x_wide, w1, b1, w2, b2)
    assert out_wide.shape == x_wide.shape
    assert jnp.allclose(out_wide, ref_wide, atol=5e-2, rtol=5e-2), \
        "mismatch vs reference (wide path)"

    print("KERNEL_OK")
</pallas_src>

<mosaic_0001>
module attributes {stable_mosaic.version = 11 : i64} {
  func.func @_mlp_kernel_batched(%arg0: i32, %arg1: memref<2x32x16xf32, #tpu.memory_space<vmem>>, %arg2: memref<32x32xbf16, #tpu.memory_space<vmem>>, %arg3: memref<32x1xf32, #tpu.memory_space<vmem>>, %arg4: memref<32x32xbf16, #tpu.memory_space<vmem>>, %arg5: memref<32x1xf32, #tpu.memory_space<vmem>>, %arg6: memref<2x32x16xf32, #tpu.memory_space<vmem>>) attributes {dimension_semantics = [#tpu.dimension_semantics<parallel>], iteration_bounds = array<i64: 1>, scalar_prefetch = 0 : i64, scratch_operands = 0 : i64, tpu.core_type = #tpu.core_type<tc>, window_params = [{transform_indices = @transform_0, window_bounds = array<i64: 2, 32, 16>}, {pipeline_mode = #tpu.pipeline_mode<synchronous>, transform_indices = @transform_1, window_bounds = array<i64: 32, 32>}, {pipeline_mode = #tpu.pipeline_mode<synchronous>, transform_indices = @transform_2, window_bounds = array<i64: 32, 1>}, {pipeline_mode = #tpu.pipeline_mode<synchronous>, transform_indices = @transform_3, window_bounds = array<i64: 32, 32>}, {pipeline_mode = #tpu.pipeline_mode<synchronous>, transform_indices = @transform_4, window_bounds = array<i64: 32, 1>}, {transform_indices = @transform_5, window_bounds = array<i64: 2, 32, 16>}]} {
    %c0 = arith.constant 0 : index
    %c0_0 = arith.constant 0 : index
    %0 = vector.load %arg2[%c0, %c0_0] : memref<32x32xbf16, #tpu.memory_space<vmem>>, vector<32x32xbf16>
    %c0_1 = arith.constant 0 : index
    %c0_2 = arith.constant 0 : index
    %1 = vector.load %arg4[%c0_1, %c0_2] : memref<32x32xbf16, #tpu.memory_space<vmem>>, vector<32x32xbf16>
    %c0_3 = arith.constant 0 : index
    %c0_4 = arith.constant 0 : index
    %2 = vector.load %arg3[%c0_3, %c0_4] : memref<32x1xf32, #tpu.memory_space<vmem>>, vector<32x1xf32>
    %c0_5 = arith.constant 0 : index
    %c0_6 = arith.constant 0 : index
    %3 = vector.load %arg5[%c0_5, %c0_6] : memref<32x1xf32, #tpu.memory_space<vmem>>, vector<32x1xf32>
    %c0_7 = arith.constant 0 : index
    %c0_8 = arith.constant 0 : index
    %c0_9 = arith.constant 0 : index
    %4 = vector.load %arg1[%c0_7, %c0_8, %c0_9] : memref<2x32x16xf32, #tpu.memory_space<vmem>>, vector<1x32x16xf32>
    %5 = vector.shape_cast %4 : vector<1x32x16xf32> to vector<32x16xf32>
    %6 = arith.truncf %5 : vector<32x16xf32> to vector<32x16xbf16>
    %cst = arith.constant dense<0.000000e+00> : vector<32x16xf32>
    %7 = tpu.matmul %0, %6, %cst {dimension_numbers = #tpu.dot_dimension_numbers<[1], [0], [0], [1], [0, 0, 1, 1], [], []>} : vector<32x32xbf16>, vector<32x16xbf16>, vector<32x16xf32> -> vector<32x16xf32>
    %8 = vector.broadcast %2 : vector<32x1xf32> to vector<32x16xf32>
    %9 = arith.addf %7, %8 : vector<32x16xf32>
    %cst_10 = arith.constant 0.000000e+00 : f32
    %10 = vector.broadcast %cst_10 : f32 to vector<32x16xf32>
    %11 = arith.maximumf %9, %10 : vector<32x16xf32>
    %12 = arith.truncf %11 : vector<32x16xf32> to vector<32x16xbf16>
    %cst_11 = arith.constant dense<0.000000e+00> : vector<32x16xf32>
    %13 = tpu.matmul %1, %12, %cst_11 {dimension_numbers = #tpu.dot_dimension_numbers<[1], [0], [0], [1], [0, 0, 1, 1], [], []>} : vector<32x32xbf16>, vector<32x16xbf16>, vector<32x16xf32> -> vector<32x16xf32>
    %14 = vector.broadcast %3 : vector<32x1xf32> to vector<32x16xf32>
    %15 = arith.addf %13, %14 : vector<32x16xf32>
    %16 = arith.addf %15, %5 : vector<32x16xf32>
    %c0_12 = arith.constant 0 : index
    %c0_13 = arith.constant 0 : index
    %c0_14 = arith.constant 0 : index
    %17 = vector.load %arg6[%c0_12, %c0_13, %c0_14] : memref<2x32x16xf32, #tpu.memory_space<vmem>>, vector<1x32x16xf32>
    %18 = vector.shape_cast %17 : vector<1x32x16xf32> to vector<32x16xf32>
    %19 = vector.shape_cast %16 : vector<32x16xf32> to vector<1x32x16xf32>
    tpu.vector_store %arg6[%c0_12, %c0_13, %c0_14], %19 {strides = array<i32>} : memref<2x32x16xf32, #tpu.memory_space<vmem>>, vector<1x32x16xf32>,
    %c1 = arith.constant 1 : index
    %c0_15 = arith.constant 0 : index
    %c0_16 = arith.constant 0 : index
    %20 = vector.load %arg1[%c1, %c0_15, %c0_16] : memref<2x32x16xf32, #tpu.memory_space<vmem>>, vector<1x32x16xf32>
    %21 = vector.shape_cast %20 : vector<1x32x16xf32> to vector<32x16xf32>
    %22 = arith.truncf %21 : vector<32x16xf32> to vector<32x16xbf16>
    %cst_17 = arith.constant dense<0.000000e+00> : vector<32x16xf32>
    %23 = tpu.matmul %0, %22, %cst_17 {dimension_numbers = #tpu.dot_dimension_numbers<[1], [0], [0], [1], [0, 0, 1, 1], [], []>} : vector<32x32xbf16>, vector<32x16xbf16>, vector<32x16xf32> -> vector<32x16xf32>
    %24 = vector.broadcast %2 : vector<32x1xf32> to vector<32x16xf32>
    %25 = arith.addf %23, %24 : vector<32x16xf32>
    %cst_18 = arith.constant 0.000000e+00 : f32
    %26 = vector.broadcast %cst_18 : f32 to vector<32x16xf32>
    %27 = arith.maximumf %25, %26 : vector<32x16xf32>
    %28 = arith.truncf %27 : vector<32x16xf32> to vector<32x16xbf16>
    %cst_19 = arith.constant dense<0.000000e+00> : vector<32x16xf32>
    %29 = tpu.matmul %1, %28, %cst_19 {dimension_numbers = #tpu.dot_dimension_numbers<[1], [0], [0], [1], [0, 0, 1, 1], [], []>} : vector<32x32xbf16>, vector<32x16xbf16>, vector<32x16xf32> -> vector<32x16xf32>
    %30 = vector.broadcast %3 : vector<32x1xf32> to vector<32x16xf32>
    %31 = arith.addf %29, %30 : vector<32x16xf32>
    %32 = arith.addf %31, %21 : vector<32x16xf32>
    %c1_20 = arith.constant 1 : index
    %c0_21 = arith.constant 0 : index
    %c0_22 = arith.constant 0 : index
    %33 = vector.load %arg6[%c1_20, %c0_21, %c0_22] : memref<2x32x16xf32, #tpu.memory_space<vmem>>, vector<1x32x16xf32>
    %34 = vector.shape_cast %33 : vector<1x32x16xf32> to vector<32x16xf32>
    %35 = vector.shape_cast %32 : vector<32x16xf32> to vector<1x32x16xf32>
    tpu.vector_store %arg6[%c1_20, %c0_21, %c0_22], %35 {strides = array<i32>} : memref<2x32x16xf32, #tpu.memory_space<vmem>>, vector<1x32x16xf32>,
    return
  }
  func.func @transform_0(%arg0: i32) -> (i32, i32, i32) {
    %c0_i32 = arith.constant 0 : i32
    %c0_i32_0 = arith.constant 0 : i32
    %c0_i32_1 = arith.constant 0 : i32
    return %arg0, %c0_i32, %c0_i32_0 : i32, i32, i32
  }
  func.func @transform_1(%arg0: i32) -> (i32, i32) {
    %c0_i32 = arith.constant 0 : i32
    %c0_i32_0 = arith.constant 0 : i32
    %c0_i32_1 = arith.constant 0 : i32
    return %c0_i32, %c0_i32_0 : i32, i32
  }
  func.func @transform_2(%arg0: i32) -> (i32, i32) {
    %c0_i32 = arith.constant 0 : i32
    %c0_i32_0 = arith.constant 0 : i32
    %c0_i32_1 = arith.constant 0 : i32
    return %c0_i32, %c0_i32_0 : i32, i32
  }
  func.func @transform_3(%arg0: i32) -> (i32, i32) {
    %c0_i32 = arith.constant 0 : i32
    %c0_i32_0 = arith.constant 0 : i32
    %c0_i32_1 = arith.constant 0 : i32
    return %c0_i32, %c0_i32_0 : i32, i32
  }
  func.func @transform_4(%arg0: i32) -> (i32, i32) {
    %c0_i32 = arith.constant 0 : i32
    %c0_i32_0 = arith.constant 0 : i32
    %c0_i32_1 = arith.constant 0 : i32
    return %c0_i32, %c0_i32_0 : i32, i32
  }
  func.func @transform_5(%arg0: i32) -> (i32, i32, i32) {
    %c0_i32 = arith.constant 0 : i32
    %c0_i32_0 = arith.constant 0 : i32
    %c0_i32_1 = arith.constant 0 : i32
    return %arg0, %c0_i32, %c0_i32_0 : i32, i32, i32
  }
}

</mosaic_0001>

<llo_original>
// kernel: tpu_custom_call.1
$region0: #{tpu_custom_call.1}
  #allocation0 [shape = 'u32[]', space=smem, size = 0x4, offset = 0x4, fixed_abs, tag = 'smem constant byte address 0x4 - core index']
  #allocation1 [shape = 'u32[144,128]{1,0:T(1,128)}', space=vmem, size = 0x12000, scoped, tag = 'internal scratch']
  %s0 = inlined_call_operand.vmem [shape: f32[2,32,16], index: 0, kind: input, shape index: {}]
  %s1 = inlined_call_operand.vmem [shape: bf16[32,32], index: 1, kind: input, shape index: {}]
  %s2 = inlined_call_operand.vmem [shape: f32[32,1], index: 2, kind: input, shape index: {}]
  %s3 = inlined_call_operand.vmem [shape: bf16[32,32], index: 3, kind: input, shape index: {}]
  %s4 = inlined_call_operand.vmem [shape: f32[32,1], index: 4, kind: input, shape index: {}]
  %s5 = inlined_call_operand.vmem [shape: f32[2,32,16], index: 5, kind: output, shape index: {}]
  %s6 = sld [smem:[#allocation0]]
  $region30: #{tpu_custom_call.1} parent=0
    _
  %s8 = ssub.s32 1, %s6
  %s9 = scalar_select 0, %s8, %s6
  // Predicated region
  $region2: #{tpu_custom_call.1} parent=0 // pred_check
    _
  $region3: #{tpu_custom_call.1} parent=0 // pred_check_branch
    %11 = sbr.rel (0) target = $region5
  $region4: #{tpu_custom_call.1} parent=0 // pred_region
    _
  $region5: #{tpu_custom_call.1} parent=0 // pred_fallthru
    _
  // Predicated region
  $region6: #{tpu_custom_call.1} parent=0 // pred_check
    _
  $region7: #{tpu_custom_call.1} parent=0 // pred_check_branch
    %13 = sbr.rel (0) target = $region9
  $region8: #{tpu_custom_call.1} parent=0 // pred_region
    _
  $region9: #{tpu_custom_call.1} parent=0 // pred_fallthru
    _
  // Predicated region
  $region10: #{tpu_custom_call.1} parent=0 // pred_check
    _
  $region11: #{tpu_custom_call.1} parent=0 // pred_check_branch
    %15 = sbr.rel (0) target = $region13
  $region12: #{tpu_custom_call.1} parent=0 // pred_region
    _
  $region13: #{tpu_custom_call.1} parent=0 // pred_fallthru
    _
  // Predicated region
  $region14: #{tpu_custom_call.1} parent=0 // pred_check
    _
  $region15: #{tpu_custom_call.1} parent=0 // pred_check_branch
    %17 = sbr.rel (0) target = $region17
  $region16: #{tpu_custom_call.1} parent=0 // pred_region
    _
  $region17: #{tpu_custom_call.1} parent=0 // pred_fallthru
    _
  // Predicated region
  $region18: #{tpu_custom_call.1} parent=0 // pred_check
    _
  $region19: #{tpu_custom_call.1} parent=0 // pred_check_branch
    %19 = sbr.rel (0) target = $region21
  $region20: #{tpu_custom_call.1} parent=0 // pred_region
    _
  $region21: #{tpu_custom_call.1} parent=0 // pred_fallthru
    _
  %v21 = vld [vmem:[%s1] sm:$0xf]
  %v22 = vld [vmem:[%s1 + $0x4] sm:$0xf]
  %v23 = vld [vmem:[%s1 + $0x8] sm:$0xf]
  %v24 = vld [vmem:[%s1 + $0xc] sm:$0xf]
  %v25 = vld [vmem:[%s3] sm:$0xf]
  %v26 = vld [vmem:[%s3 + $0x4] sm:$0xf]
  %v27 = vld [vmem:[%s3 + $0x8] sm:$0xf]
  %v28 = vld [vmem:[%s3 + $0xc] sm:$0xf]
  %v29 = vld [vmem:[%s2] sm:$0xff]
  %v30 = vld [vmem:[%s2 + $0x8] sm:$0xff]
  %v31 = vld [vmem:[%s2 + $0x10] sm:$0xff]
  %v32 = vld [vmem:[%s2 + $0x18] sm:$0xff]
  %v33 = vld [vmem:[%s4] sm:$0xff]
  %v34 = vld [vmem:[%s4 + $0x8] sm:$0xff]
  %v35 = vld [vmem:[%s4 + $0x10] sm:$0xff]
  %v36 = vld [vmem:[%s4 + $0x18] sm:$0xff]
  %v37 = vld [vmem:[%s0] sm:$0xff]
  %v38 = vld [vmem:[%s0 + $0x8] sm:$0xff]
  %v39 = vld [vmem:[%s0 + $0x10] sm:$0xff]
  %v40 = vld [vmem:[%s0 + $0x18] sm:$0xff]
  %v41 = vpack.c.bf16 %v38, %v37
  %v42 = vpack.c.bf16 %v40, %v39
  %44 = vset.pattern.permute.xlu0 0
  %45 = vperm.xlu0 %44, %v29
  %v46 = vpop.permute.xlu0 %45
  %49 = vset.pattern.permute.xlu0 0
  %50 = vperm.xlu0 %49, %v30
  %v51 = vpop.permute.xlu0 %50
  %54 = vset.pattern.permute.xlu0 0
  %55 = vperm.xlu0 %54, %v31
  %v56 = vpop.permute.xlu0 %55
  %59 = vset.pattern.permute.xlu0 0
  %60 = vperm.xlu0 %59, %v32
  %v61 = vpop.permute.xlu0 %60
  %v67 = vunpack.c.l.b16 %v21
  %v68 = vunpack.c.l.b16 %v22
  %v69 = vunpack.c.l.b16 %v23
  %v70 = vunpack.c.l.b16 %v24
  %v71 = vpack.c.b16 %v68, %v67
  %v72 = vpack.c.b16 %v70, %v69
  %vm73 = vcmask 261120
  %v75 = vsel %vm73, %v71, 0
  %v78 = vsel %vm73, %v72, 0
  %80 = vmatprep.subr.bf16.mxu0 0
  %81 = vmatpush1.bf16.msra.mxu0 %v41
  %82 = vmatprep.subr.bf16.mxu0 0
  %83 = vmatpush1.bf16.msra.mxu0 %v42
  %84 = vmatprep.subr.bf16.mxu0 0
  %85 = vmatpush1.bf16.msra.mxu0 0
  %86 = vmatprep.subr.bf16.mxu0 0
  %87 = vmatpush1.bf16.msra.mxu0 0
  %88 = vmatprep.subr.bf16.mxu0 0
  %89 = vmatpush1.bf16.msra.mxu0 0
  %90 = vmatprep.subr.bf16.mxu0 0
  %91 = vmatpush1.bf16.msra.mxu0 0
  %92 = vmatprep.subr.bf16.mxu0 0
  %93 = vmatpush1.bf16.msra.mxu0 0
  %94 = vmatprep.subr.bf16.mxu0 0
  %95 = vmatpush1.bf16.msra.mxu0 0
  %96 = vmatprep.subr.bf16.mxu0 0
  %97 = vmatpush1.bf16.msra.mxu0 0
  %98 = vmatprep.subr.bf16.mxu0 0
  %99 = vmatpush1.bf16.msra.mxu0 0
  %100 = vmatprep.subr.bf16.mxu0 0
  %101 = vmatpush1.bf16.msra.mxu0 0
  %102 = vmatprep.subr.bf16.mxu0 0
  %103 = vmatpush1.bf16.msra.mxu0 0
  %104 = vmatprep.subr.bf16.mxu0 0
  %105 = vmatpush1.bf16.msra.mxu0 0
  %106 = vmatprep.subr.bf16.mxu0 0
  %107 = vmatpush1.bf16.msra.mxu0 0
  %108 = vmatprep.subr.bf16.mxu0 0
  %109 = vmatpush1.bf16.msra.mxu0 0
  %110 = vmatprep.subr.bf16.mxu0 0
  %111 = vmatpush1.bf16.msra.mxu0 0
  %112 = vmatprep.mubr.bf16.mxu0 0
  %113 = vmatmul.mubr.bf16.gmra.mrb[0].mxu0 %v75
  %v114 = vpop.f32.mrb[0].mxu0
  %v115 = vadd.f32 %v46, %v114
  %v116 = vpop.f32.mrb[0].mxu0
  %v117 = vpop.f32.mrb[0].mxu0
  %v118 = vadd.f32 %v51, %v117
  %v119 = vpop.f32.mrb[0].mxu0
  %120 = vmatprep.mubr.bf16.mxu0 0
  %121 = vmatmul.mubr.bf16.gmra.mrb[0].mxu0 %v78
  %v122 = vpop.f32.mrb[0].mxu0
  %v123 = vadd.f32 %v56, %v122
  %v124 = vpop.f32.mrb[0].mxu0
  %v125 = vpop.f32.mrb[0].mxu0
  %v126 = vadd.f32 %v61, %v125
  %v127 = vpop.f32.mrb[0].mxu0
  %128 = vdwg.mxu0
  %v129 = vmax.f32 %v115, 0.0
  %v130 = vmax.f32 %v118, 0.0
  %v131 = vmax.f32 %v123, 0.0
  %v132 = vmax.f32 %v126, 0.0
  %v133 = vpack.c.bf16 %v130, %v129
  %v134 = vpack.c.bf16 %v132, %v131
  %136 = vset.pattern.permute.xlu0 0
  %137 = vperm.xlu0 %136, %v33
  %v138 = vpop.permute.xlu0 %137
  %141 = vset.pattern.permute.xlu0 0
  %142 = vperm.xlu0 %141, %v34
  %v143 = vpop.permute.xlu0 %142
  %146 = vset.pattern.permute.xlu0 0
  %147 = vperm.xlu0 %146, %v35
  %v148 = vpop.permute.xlu0 %147
  %151 = vset.pattern.permute.xlu0 0
  %152 = vperm.xlu0 %151, %v36
  %v153 = vpop.permute.xlu0 %152
  %v159 = vunpack.c.l.b16 %v25
  %v160 = vunpack.c.l.b16 %v26
  %v161 = vunpack.c.l.b16 %v27
  %v162 = vunpack.c.l.b16 %v28
  %v163 = vpack.c.b16 %v160, %v159
  %v164 = vpack.c.b16 %v162, %v161
  %v166 = vsel %vm73, %v163, 0
  %v169 = vsel %vm73, %v164, 0
  %171 = vmatprep.subr.bf16.mxu0 0
  %172 = vmatpush1.bf16.msra.mxu0 %v133
  %173 = vmatprep.subr.bf16.mxu0 0
  %174 = vmatpush1.bf16.msra.mxu0 %v134
  %175 = vmatprep.subr.bf16.mxu0 0
  %176 = vmatpush1.bf16.msra.mxu0 0
  %177 = vmatprep.subr.bf16.mxu0 0
  %178 = vmatpush1.bf16.msra.mxu0 0
  %179 = vmatprep.subr.bf16.mxu0 0
  %180 = vmatpush1.bf16.msra.mxu0 0
  %181 = vmatprep.subr.bf16.mxu0 0
  %182 = vmatpush1.bf16.msra.mxu0 0
  %183 = vmatprep.subr.bf16.mxu0 0
  %184 = vmatpush1.bf16.msra.mxu0 0
  %185 = vmatprep.subr.bf16.mxu0 0
  %186 = vmatpush1.bf16.msra.mxu0 0
  %187 = vmatprep.subr.bf16.mxu0 0
  %188 = vmatpush1.bf16.msra.mxu0 0
  %189 = vmatprep.subr.bf16.mxu0 0
  %190 = vmatpush1.bf16.msra.mxu0 0
  %191 = vmatprep.subr.bf16.mxu0 0
  %192 = vmatpush1.bf16.msra.mxu0 0
  %193 = vmatprep.subr.bf16.mxu0 0
  %194 = vmatpush1.bf16.msra.mxu0 0
  %195 = vmatprep.subr.bf16.mxu0 0
  %196 = vmatpush1.bf16.msra.mxu0 0
  %197 = vmatprep.subr.bf16.mxu0 0
  %198 = vmatpush1.bf16.msra.mxu0 0
  %199 = vmatprep.subr.bf16.mxu0 0
  %200 = vmatpush1.bf16.msra.mxu0 0
  %201 = vmatprep.subr.bf16.mxu0 0
  %202 = vmatpush1.bf16.msra.mxu0 0
  %203 = vmatprep.mubr.bf16.mxu0 0
  %204 = vmatmul.mubr.bf16.gmra.mrb[0].mxu0 %v166
  %v205 = vpop.f32.mrb[0].mxu0
  %v206 = vadd.f32 %v138, %v205
  %v207 = vpop.f32.mrb[0].mxu0
  %v208 = vpop.f32.mrb[0].mxu0
  %v209 = vadd.f32 %v143, %v208
  %v210 = vpop.f32.mrb[0].mxu0
  %211 = vmatprep.mubr.bf16.mxu0 0
  %212 = vmatmul.mubr.bf16.gmra.mrb[0].mxu0 %v169
  %v213 = vpop.f32.mrb[0].mxu0
  %v214 = vadd.f32 %v148, %v213
  %v215 = vpop.f32.mrb[0].mxu0
  %v216 = vpop.f32.mrb[0].mxu0
  %v217 = vadd.f32 %v153, %v216
  %v218 = vpop.f32.mrb[0].mxu0
  %219 = vdwg.mxu0
  %v220 = vadd.f32 %v206, %v37
  %v221 = vadd.f32 %v209, %v38
  %v222 = vadd.f32 %v214, %v39
  %v223 = vadd.f32 %v217, %v40
  %vm224 = vcmask 130048
  %225 = vst.msk [vmem:[%s5] sm:$0xff] %vm224, %v220
  %226 = vst.msk [vmem:[%s5 + $0x8] sm:$0xff] %vm224, %v221
  %227 = vst.msk [vmem:[%s5 + $0x10] sm:$0xff] %vm224, %v222
  %228 = vst.msk [vmem:[%s5 + $0x18] sm:$0xff] %vm224, %v223
  %s229 = scalar_lea.vmem %s0, 32
  %v230 = vld [vmem:[%s229] sm:$0xff]
  %v231 = vld [vmem:[%s229 + $0x8] sm:$0xff]
  %v232 = vld [vmem:[%s229 + $0x10] sm:$0xff]
  %v233 = vld [vmem:[%s229 + $0x18] sm:$0xff]
  %v234 = vpack.c.bf16 %v231, %v230
  %v235 = vpack.c.bf16 %v233, %v232
  %236 = vmatprep.subr.bf16.mxu0 0
  %237 = vmatpush1.bf16.msra.mxu0 %v234
  %238 = vmatprep.subr.bf16.mxu0 0
  %239 = vmatpush1.bf16.msra.mxu0 %v235
  %240 = vmatprep.subr.bf16.mxu0 0
  %241 = vmatpush1.bf16.msra.mxu0 0
  %242 = vmatprep.subr.bf16.mxu0 0
  %243 = vmatpush1.bf16.msra.mxu0 0
  %244 = vmatprep.subr.bf16.mxu0 0
  %245 = vmatpush1.bf16.msra.mxu0 0
  %246 = vmatprep.subr.bf16.mxu0 0
  %247 = vmatpush1.bf16.msra.mxu0 0
  %248 = vmatprep.subr.bf16.mxu0 0
  %249 = vmatpush1.bf16.msra.mxu0 0
  %250 = vmatprep.subr.bf16.mxu0 0
  %251 = vmatpush1.bf16.msra.mxu0 0
  %252 = vmatprep.subr.bf16.mxu0 0
  %253 = vmatpush1.bf16.msra.mxu0 0
  %254 = vmatprep.subr.bf16.mxu0 0
  %255 = vmatpush1.bf16.msra.mxu0 0
  %256 = vmatprep.subr.bf16.mxu0 0
  %257 = vmatpush1.bf16.msra.mxu0 0
  %258 = vmatprep.subr.bf16.mxu0 0
  %259 = vmatpush1.bf16.msra.mxu0 0
  %260 = vmatprep.subr.bf16.mxu0 0
  %261 = vmatpush1.bf16.msra.mxu0 0
  %262 = vmatprep.subr.bf16.mxu0 0
  %263 = vmatpush1.bf16.msra.mxu0 0
  %264 = vmatprep.subr.bf16.mxu0 0
  %265 = vmatpush1.bf16.msra.mxu0 0
  %266 = vmatprep.subr.bf16.mxu0 0
  %267 = vmatpush1.bf16.msra.mxu0 0
  %268 = vmatprep.mubr.bf16.mxu0 0
  %269 = vmatmul.mubr.bf16.gmra.mrb[0].mxu0 %v75
  %v270 = vpop.f32.mrb[0].mxu0
  %v271 = vadd.f32 %v46, %v270
  %v272 = vpop.f32.mrb[0].mxu0
  %v273 = vpop.f32.mrb[0].mxu0
  %v274 = vadd.f32 %v51, %v273
  %v275 = vpop.f32.mrb[0].mxu0
  %276 = vmatprep.mubr.bf16.mxu0 0
  %277 = vmatmul.mubr.bf16.gmra.mrb[0].mxu0 %v78
  %v278 = vpop.f32.mrb[0].mxu0
  %v279 = vadd.f32 %v56, %v278
  %v280 = vpop.f32.mrb[0].mxu0
  %v281 = vpop.f32.mrb[0].mxu0
  %v282 = vadd.f32 %v61, %v281
  %v283 = vpop.f32.mrb[0].mxu0
  %284 = vdwg.mxu0
  %v285 = vmax.f32 %v271, 0.0
  %v286 = vmax.f32 %v274, 0.0
  %v287 = vmax.f32 %v279, 0.0
  %v288 = vmax.f32 %v282, 0.0
  %v289 = vpack.c.bf16 %v286, %v285
  %v290 = vpack.c.bf16 %v288, %v287
  %291 = vmatprep.subr.bf16.mxu0 0
  %292 = vmatpush1.bf16.msra.mxu0 %v289
  %293 = vmatprep.subr.bf16.mxu0 0
  %294 = vmatpush1.bf16.msra.mxu0 %v290
  %295 = vmatprep.subr.bf16.mxu0 0
  %296 = vmatpush1.bf16.msra.mxu0 0
  %297 = vmatprep.subr.bf16.mxu0 0
  %298 = vmatpush1.bf16.msra.mxu0 0
  %299 = vmatprep.subr.bf16.mxu0 0
  %300 = vmatpush1.bf16.msra.mxu0 0
  %301 = vmatprep.subr.bf16.mxu0 0
  %302 = vmatpush1.bf16.msra.mxu0 0
  %303 = vmatprep.subr.bf16.mxu0 0
  %304 = vmatpush1.bf16.msra.mxu0 0
  %305 = vmatprep.subr.bf16.mxu0 0
  %306 = vmatpush1.bf16.msra.mxu0 0
  %307 = vmatprep.subr.bf16.mxu0 0
  %308 = vmatpush1.bf16.msra.mxu0 0
  %309 = vmatprep.subr.bf16.mxu0 0
  %310 = vmatpush1.bf16.msra.mxu0 0
  %311 = vmatprep.subr.bf16.mxu0 0
  %312 = vmatpush1.bf16.msra.mxu0 0
  %313 = vmatprep.subr.bf16.mxu0 0
  %314 = vmatpush1.bf16.msra.mxu0 0
  %315 = vmatprep.subr.bf16.mxu0 0
  %316 = vmatpush1.bf16.msra.mxu0 0
  %317 = vmatprep.subr.bf16.mxu0 0
  %318 = vmatpush1.bf16.msra.mxu0 0
  %319 = vmatprep.subr.bf16.mxu0 0
  %320 = vmatpush1.bf16.msra.mxu0 0
  %321 = vmatprep.subr.bf16.mxu0 0
  %322 = vmatpush1.bf16.msra.mxu0 0
  %323 = vmatprep.mubr.bf16.mxu0 0
  %324 = vmatmul.mubr.bf16.gmra.mrb[0].mxu0 %v166
  %v325 = vpop.f32.mrb[0].mxu0
  %v326 = vadd.f32 %v138, %v325
  %v327 = vpop.f32.mrb[0].mxu0
  %v328 = vpop.f32.mrb[0].mxu0
  %v329 = vadd.f32 %v143, %v328
  %v330 = vpop.f32.mrb[0].mxu0
  %331 = vmatprep.mubr.bf16.mxu0 0
  %332 = vmatmul.mubr.bf16.gmra.mrb[0].mxu0 %v169
  %v333 = vpop.f32.mrb[0].mxu0
  %v334 = vadd.f32 %v148, %v333
  %v335 = vpop.f32.mrb[0].mxu0
  %v336 = vpop.f32.mrb[0].mxu0
  %v337 = vadd.f32 %v153, %v336
  %v338 = vpop.f32.mrb[0].mxu0
  %339 = vdwg.mxu0
  %v340 = vadd.f32 %v326, %v230
  %v341 = vadd.f32 %v329, %v231
  %v342 = vadd.f32 %v334, %v232
  %v343 = vadd.f32 %v337, %v233
  %s344 = scalar_lea.vmem %s5, 32
  %345 = vst.msk [vmem:[%s344] sm:$0xff] %vm224, %v340
  %346 = vst.msk [vmem:[%s344 + $0x8] sm:$0xff] %vm224, %v341
  %347 = vst.msk [vmem:[%s344 + $0x10] sm:$0xff] %vm224, %v342
  %348 = vst.msk [vmem:[%s344 + $0x18] sm:$0xff] %vm224, %v343
  // Predicated region
  $region22: #{tpu_custom_call.1} parent=0 // pred_check
    _
  $region23: #{tpu_custom_call.1} parent=0 // pred_check_branch
    %350 = sbr.rel (0) target = $region25
  $region24: #{tpu_custom_call.1} parent=0 // pred_region
    _
  $region25: #{tpu_custom_call.1} parent=0 // pred_fallthru
    _
  // Predicated region
  $region26: #{tpu_custom_call.1} parent=0 // pred_check
    _
  $region27: #{tpu_custom_call.1} parent=0 // pred_check_branch
    %352 = sbr.rel (0) target = $region29
  $region28: #{tpu_custom_call.1} parent=0 // pred_region
    _
  $region29: #{tpu_custom_call.1} parent=0 // pred_fallthru
    _

</llo_original>
